<compile_context>
chip_gen: v6e
topology: v6e:2x2x1
jax: 0.10.0
libtpu: 0.0.40
codegen_flags: <defaults>
</compile_context>

<pallas_src>
import functools

import numpy as np
import jax
import jax.numpy as jnp
from jax.experimental import pallas as pl
from jax.experimental.pallas import tpu as pltpu

EPS = 1e-15


def _round_up(x, m):
    return ((x + m - 1) // m) * m


def _mp2vec_kernel(idx_ref, tab_ref, out_ref, acc_ref, *, tb, p, n):
    """Grid = (batch_tiles, table_row_tiles); the row-tile axis is a reduction."""
    r = pl.program_id(1)
    tr = tab_ref.shape[0]
    k = 1 + p + n

    @pl.when(r == 0)
    def _init():
        acc_ref[...] = jnp.zeros_like(acc_ref)

    # Exact one-hot gather of every sampled row that falls inside this table
    # tile: (k*tb, TR) one-hot @ (TR, D) table tile on the MXU, accumulated
    # across tiles (each index hits exactly one tile, others contribute 0).
    idx = idx_ref[...]                                              # (k*tb, 1) int32
    rows = jax.lax.broadcasted_iota(jnp.int32, (k * tb, tr), 1) + r * tr
    onehot = (rows == idx).astype(jnp.float32)                      # exact 0.0 / 1.0
    acc_ref[...] += jnp.dot(onehot, tab_ref[...],
                            preferred_element_type=jnp.float32)     # (k*tb, D)

    @pl.when(r == pl.num_programs(1) - 1)
    def _finalize():
        acc = acc_ref[...]                                # (k*tb, D); rows are k-major
        start = acc[0:tb, :]                              # (tb, D) start embeddings
        samp = acc[tb:, :]                                # ((p+n)*tb, D) pos then neg
        start_rep = jnp.concatenate([start] * (p + n), axis=0)      # ((p+n)*tb, D)
        scores = jnp.sum(start_rep * samp, axis=1, keepdims=True)   # ((p+n)*tb, 1)

        pos_lp = jnp.log(jax.nn.sigmoid(scores[0:p * tb, :]) + EPS)       # (p*tb, 1)
        neg_lp = jnp.log(1.0 - jax.nn.sigmoid(scores[p * tb:, :]) + EPS)  # (n*tb, 1)

        pos_sum = pos_lp[0:tb, :]
        for kk in range(1, p):
            pos_sum = pos_sum + pos_lp[kk * tb:(kk + 1) * tb, :]
        neg_sum = neg_lp[0:tb, :]
        for kk in range(1, n):
            neg_sum = neg_sum + neg_lp[kk * tb:(kk + 1) * tb, :]

        loss = -(pos_sum / p + neg_sum / n)               # (tb, 1)
        out_ref[...] = jnp.transpose(loss)                # (1, tb): lane-dense store


def mp2vec_forward(start_embeds, end_embeds, node_types,
                   start_node, pos_samples, neg_samples,
                   *, block_b=128, block_rows=512):
    """JAX glue: index flattening / padding + pallas_call. Hot path is in-kernel."""
    V, T, D = end_embeds.shape
    B, P = pos_samples.shape
    N = neg_samples.shape[1]
    K = 1 + P + N

    # ---- flatten every needed row into the combined [start ; end] table ----
    node_type = node_types[start_node].astype(jnp.int32)             # (B, 1)
    start_rows = start_node.astype(jnp.int32)                        # rows [0, V)
    pos_rows = V + pos_samples.astype(jnp.int32) * T + node_type     # rows [V, V+V*T)
    neg_rows = V + neg_samples.astype(jnp.int32) * T + node_type
    cmb = jnp.concatenate([start_rows, pos_rows, neg_rows], axis=1)  # (B, K)

    # ---- batch tiling ("parallel" grid axis), padded to a sublane multiple --
    TB = _round_up(min(block_b, _round_up(B, 8)), 8)
    B_pad = _round_up(B, TB)
    num_bt = B_pad // TB
    cmb = jnp.pad(cmb, ((0, B_pad - B), (0, 0)))   # pad rows gather row 0, discarded
    # per-batch-tile k-major layout: gathered row index = k * TB + b_local
    idx = cmb.reshape(num_bt, TB, K).transpose(0, 2, 1).reshape(num_bt * K * TB, 1)

    # ---- combined table, streamed in row tiles over the reduction axis ------
    tab = jnp.concatenate(
        [start_embeds.astype(jnp.float32),
         end_embeds.reshape(V * T, D).astype(jnp.float32)], axis=0)  # (V + V*T, D)
    R = tab.shape[0]
    TR = _round_up(min(block_rows, _round_up(R, 8)), 8)
    R_pad = _round_up(R, TR)
    num_r = R_pad // TR
    tab = jnp.pad(tab, ((0, R_pad - R), (0, 0)))

    # TODO(synk): for very large vocabularies, replace the streamed one-hot
    # gather with a scalar-prefetch + HBM DMA row-gather (memory_space=pl.ANY)
    # so HBM traffic scales with B*(1+P+N) rows instead of the table size.

    kernel = functools.partial(_mp2vec_kernel, tb=TB, p=P, n=N)

    out = pl.pallas_call(
        kernel,
        out_shape=jax.ShapeDtypeStruct((1, B_pad), jnp.float32),
        grid_spec=pltpu.PrefetchScalarGridSpec(
            num_scalar_prefetch=0,
            grid=(num_bt, num_r),                                    # reduction last
            in_specs=[
                pl.BlockSpec((K * TB, 1), lambda bt, r: (bt, 0)),    # sample row ids
                pl.BlockSpec((TR, D), lambda bt, r: (r, 0)),         # table row tile
            ],
            out_specs=pl.BlockSpec((1, TB), lambda bt, r: (0, bt)),  # lane-dense loss
            scratch_shapes=[pltpu.VMEM((K * TB, D), jnp.float32)],
        ),
        compiler_params=pltpu.CompilerParams(
            dimension_semantics=("parallel", "arbitrary"),
            vmem_limit_bytes=64 * 1024 * 1024,
        ),
    )(idx, tab)
    return out[0, :B]                                                # (B,)


def mp2vec_reference(start_embeds, end_embeds, node_types,
                     start_node, pos_samples, neg_samples):
    """Pure-JAX reference mirroring the PyTorch forward exactly."""
    start_emb = start_embeds[start_node]               # (B, 1, D)
    node_type = node_types[start_node]                 # (B, 1)
    pos_emb = end_embeds[pos_samples, node_type]       # (B, P, D)
    neg_emb = end_embeds[neg_samples, node_type]       # (B, N, D)
    pos_dot = jnp.sum(start_emb * pos_emb, axis=-1)    # (B, P)
    neg_dot = jnp.sum(start_emb * neg_emb, axis=-1)    # (B, N)
    pos_prob = jax.nn.sigmoid(pos_dot)
    neg_prob = jax.nn.sigmoid(neg_dot)
    return (-jnp.mean(jnp.log(pos_prob + EPS), axis=1)
            - jnp.mean(jnp.log(1.0 - neg_prob + EPS), axis=1))


if __name__ == "__main__":
    node_size, embed_dim = 64, 32
    B, P, N = 2, 4, 6

    # Deterministic parameter init (mirrors torch.nn.init.normal_).
    node_types = jnp.asarray(np.arange(node_size) % 3, dtype=jnp.int32)    # (V,)
    num_types = int(np.max(np.asarray(node_types))) + 1                     # = 3

    key = jax.random.PRNGKey(0)
    k_start, k_end, k_s, k_p, k_n = jax.random.split(key, 5)
    start_embeds = jax.random.normal(k_start, (node_size, embed_dim), jnp.float32)
    end_embeds = jax.random.normal(k_end, (node_size, num_types, embed_dim), jnp.float32)

    # start_node is (B, 1) so node_type broadcasts against (B, P)/(B, N) samples,
    # exactly as in the PyTorch module.
    start_node = jax.random.randint(k_s, (B, 1), 0, node_size, dtype=jnp.int32)
    pos_samples = jax.random.randint(k_p, (B, P), 0, node_size, dtype=jnp.int32)
    neg_samples = jax.random.randint(k_n, (B, N), 0, node_size, dtype=jnp.int32)

    # block_rows=128 -> 2 table-row tiles at this toy size, exercising the
    # streamed-reduction / accumulator path of the kernel.
    loss = mp2vec_forward(start_embeds, end_embeds, node_types,
                          start_node, pos_samples, neg_samples, block_rows=128)
    loss = jax.block_until_ready(loss)

    ref = mp2vec_reference(start_embeds, end_embeds, node_types,
                           start_node, pos_samples, neg_samples)
    ref = jax.block_until_ready(ref)

    assert loss.shape == (B,)
    np.testing.assert_allclose(np.asarray(loss), np.asarray(ref),
                               rtol=2e-3, atol=2e-3)
    print("KERNEL_OK")
</pallas_src>

<mosaic_0001>
module attributes {stable_mosaic.version = 11 : i64} {
  func.func @_mp2vec_kernel(%arg0: i32, %arg1: i32, %arg2: memref<88x1xi32, #tpu.memory_space<vmem>>, %arg3: memref<128x32xf32, #tpu.memory_space<vmem>>, %arg4: memref<1x8xf32, #tpu.memory_space<vmem>>, %arg5: memref<88x32xf32, #tpu.memory_space<vmem>>) attributes {dimension_semantics = [#tpu.dimension_semantics<parallel>, #tpu.dimension_semantics<arbitrary>], iteration_bounds = array<i64: 1, 2>, scalar_prefetch = 0 : i64, scratch_operands = 1 : i64, tpu.core_type = #tpu.core_type<tc>, window_params = [{transform_indices = @transform_0, window_bounds = array<i64: 88, 1>}, {transform_indices = @transform_1, window_bounds = array<i64: 128, 32>}, {transform_indices = @transform_2, window_bounds = array<i64: 1, 8>}]} {
    %c0_i32 = arith.constant 0 : i32
    %0 = arith.cmpi eq, %arg1, %c0_i32 : i32
    %1 = arith.extui %0 : i1 to i32
    %c0_i32_0 = arith.constant 0 : i32
    %2 = arith.cmpi ne, %1, %c0_i32_0 : i32
    scf.if %2 {
      %cst_9 = arith.constant 0.000000e+00 : f32
      %20 = vector.broadcast %cst_9 : f32 to vector<88x32xf32>
      %c0_10 = arith.constant 0 : index
      %c0_11 = arith.constant 0 : index
      %21 = vector.load %arg5[%c0_10, %c0_11] : memref<88x32xf32, #tpu.memory_space<vmem>>, vector<88x32xf32>
      tpu.vector_store %arg5[%c0_10, %c0_11], %20 {strides = array<i32>} : memref<88x32xf32, #tpu.memory_space<vmem>>, vector<88x32xf32>,
    } else {
    }
    %c0 = arith.constant 0 : index
    %c0_1 = arith.constant 0 : index
    %3 = vector.load %arg2[%c0, %c0_1] : memref<88x1xi32, #tpu.memory_space<vmem>>, vector<88x1xi32>
    %4 = tpu.iota {dimensions = array<i32: 1>} : vector<88x128xi32>
    %c128_i32 = arith.constant 128 : i32
    %5 = arith.muli %arg1, %c128_i32 : i32
    %6 = vector.broadcast %5 : i32 to vector<88x128xi32>
    %7 = arith.addi %4, %6 : vector<88x128xi32>
    %8 = vector.broadcast %3 : vector<88x1xi32> to vector<88x128xi32>
    %9 = arith.cmpi eq, %7, %8 : vector<88x128xi32>
    %10 = arith.extui %9 : vector<88x128xi1> to vector<88x128xi32>
    %11 = arith.sitofp %10 : vector<88x128xi32> to vector<88x128xf32>
    %c0_2 = arith.constant 0 : index
    %c0_3 = arith.constant 0 : index
    %12 = vector.load %arg5[%c0_2, %c0_3] : memref<88x32xf32, #tpu.memory_space<vmem>>, vector<88x32xf32>
    %c0_4 = arith.constant 0 : index
    %c0_5 = arith.constant 0 : index
    %13 = vector.load %arg3[%c0_4, %c0_5] : memref<128x32xf32, #tpu.memory_space<vmem>>, vector<128x32xf32>
    %cst = arith.constant dense<0.000000e+00> : vector<88x32xf32>
    %14 = tpu.matmul %11, %13, %cst {dimension_numbers = #tpu.dot_dimension_numbers<[1], [0], [0], [1], [0, 0, 1, 1], [], []>} : vector<88x128xf32>, vector<128x32xf32>, vector<88x32xf32> -> vector<88x32xf32>
    %15 = arith.addf %12, %14 : vector<88x32xf32>
    %c0_6 = arith.constant 0 : index
    %c0_7 = arith.constant 0 : index
    %16 = vector.load %arg5[%c0_6, %c0_7] : memref<88x32xf32, #tpu.memory_space<vmem>>, vector<88x32xf32>
    tpu.vector_store %arg5[%c0_6, %c0_7], %15 {strides = array<i32>} : memref<88x32xf32, #tpu.memory_space<vmem>>, vector<88x32xf32>,
    %c1_i32 = arith.constant 1 : i32
    %17 = arith.cmpi eq, %arg1, %c1_i32 : i32
    %18 = arith.extui %17 : i1 to i32
    %c0_i32_8 = arith.constant 0 : i32
    %19 = arith.cmpi ne, %18, %c0_i32_8 : i32
    scf.if %19 {
      %c0_9 = arith.constant 0 : index
      %c0_10 = arith.constant 0 : index
      %20 = vector.load %arg5[%c0_9, %c0_10] : memref<88x32xf32, #tpu.memory_space<vmem>>, vector<88x32xf32>
      %21 = vector.extract_strided_slice %20 {offsets = [0, 0], sizes = [8, 32], strides = [1, 1]} : vector<88x32xf32> to vector<8x32xf32>
      %22 = vector.extract_strided_slice %20 {offsets = [8, 0], sizes = [80, 32], strides = [1, 1]} : vector<88x32xf32> to vector<80x32xf32>
      %23 = tpu.concatenate %21, %21, %21, %21, %21, %21, %21, %21, %21, %21 in 0 : vector<8x32xf32>, vector<8x32xf32>, vector<8x32xf32>, vector<8x32xf32>, vector<8x32xf32>, vector<8x32xf32>, vector<8x32xf32>, vector<8x32xf32>, vector<8x32xf32>, vector<8x32xf32> -> vector<80x32xf32>
      %24 = arith.mulf %23, %22 : vector<80x32xf32>
      %cst_11 = arith.constant dense<0.000000e+00> : vector<80xf32>
      %25 = vector.multi_reduction <add>, %24, %cst_11 [1] : vector<80x32xf32> to vector<80xf32>
      %26 = vector.shape_cast %25 : vector<80xf32> to vector<80x1xf32>
      %27 = vector.extract_strided_slice %26 {offsets = [0, 0], sizes = [32, 1], strides = [1, 1]} : vector<80x1xf32> to vector<32x1xf32>
      %28 = arith.negf %27 : vector<32x1xf32>
      %29 = math.exp %28 : vector<32x1xf32>
      %cst_12 = arith.constant 1.000000e+00 : f32
      %30 = vector.broadcast %cst_12 : f32 to vector<32x1xf32>
      %31 = arith.addf %30, %29 : vector<32x1xf32>
      %32 = arith.divf %30, %31 : vector<32x1xf32>
      %cst_13 = arith.constant 1.000000e-15 : f32
      %33 = vector.broadcast %cst_13 : f32 to vector<32x1xf32>
      %34 = arith.addf %32, %33 : vector<32x1xf32>
      %35 = math.log %34 : vector<32x1xf32>
      %36 = vector.extract_strided_slice %26 {offsets = [32, 0], sizes = [48, 1], strides = [1, 1]} : vector<80x1xf32> to vector<48x1xf32>
      %37 = arith.negf %36 : vector<48x1xf32>
      %38 = math.exp %37 : vector<48x1xf32>
      %cst_14 = arith.constant 1.000000e+00 : f32
      %39 = vector.broadcast %cst_14 : f32 to vector<48x1xf32>
      %40 = arith.addf %39, %38 : vector<48x1xf32>
      %41 = arith.divf %39, %40 : vector<48x1xf32>
      %cst_15 = arith.constant 1.000000e+00 : f32
      %42 = vector.broadcast %cst_15 : f32 to vector<48x1xf32>
      %43 = arith.subf %42, %41 : vector<48x1xf32>
      %cst_16 = arith.constant 1.000000e-15 : f32
      %44 = vector.broadcast %cst_16 : f32 to vector<48x1xf32>
      %45 = arith.addf %43, %44 : vector<48x1xf32>
      %46 = math.log %45 : vector<48x1xf32>
      %47 = vector.extract_strided_slice %35 {offsets = [0, 0], sizes = [8, 1], strides = [1, 1]} : vector<32x1xf32> to vector<8x1xf32>
      %48 = vector.extract_strided_slice %35 {offsets = [8, 0], sizes = [8, 1], strides = [1, 1]} : vector<32x1xf32> to vector<8x1xf32>
      %49 = arith.addf %47, %48 : vector<8x1xf32>
      %50 = vector.extract_strided_slice %35 {offsets = [16, 0], sizes = [8, 1], strides = [1, 1]} : vector<32x1xf32> to vector<8x1xf32>
      %51 = arith.addf %49, %50 : vector<8x1xf32>
      %52 = vector.extract_strided_slice %35 {offsets = [24, 0], sizes = [8, 1], strides = [1, 1]} : vector<32x1xf32> to vector<8x1xf32>
      %53 = arith.addf %51, %52 : vector<8x1xf32>
      %54 = vector.extract_strided_slice %46 {offsets = [0, 0], sizes = [8, 1], strides = [1, 1]} : vector<48x1xf32> to vector<8x1xf32>
      %55 = vector.extract_strided_slice %46 {offsets = [8, 0], sizes = [8, 1], strides = [1, 1]} : vector<48x1xf32> to vector<8x1xf32>
      %56 = arith.addf %54, %55 : vector<8x1xf32>
      %57 = vector.extract_strided_slice %46 {offsets = [16, 0], sizes = [8, 1], strides = [1, 1]} : vector<48x1xf32> to vector<8x1xf32>
      %58 = arith.addf %56, %57 : vector<8x1xf32>
      %59 = vector.extract_strided_slice %46 {offsets = [24, 0], sizes = [8, 1], strides = [1, 1]} : vector<48x1xf32> to vector<8x1xf32>
      %60 = arith.addf %58, %59 : vector<8x1xf32>
      %61 = vector.extract_strided_slice %46 {offsets = [32, 0], sizes = [8, 1], strides = [1, 1]} : vector<48x1xf32> to vector<8x1xf32>
      %62 = arith.addf %60, %61 : vector<8x1xf32>
      %63 = vector.extract_strided_slice %46 {offsets = [40, 0], sizes = [8, 1], strides = [1, 1]} : vector<48x1xf32> to vector<8x1xf32>
      %64 = arith.addf %62, %63 : vector<8x1xf32>
      %cst_17 = arith.constant 4.000000e+00 : f32
      %65 = vector.broadcast %cst_17 : f32 to vector<8x1xf32>
      %66 = arith.divf %53, %65 : vector<8x1xf32>
      %cst_18 = arith.constant 6.000000e+00 : f32
      %67 = vector.broadcast %cst_18 : f32 to vector<8x1xf32>
      %68 = arith.divf %64, %67 : vector<8x1xf32>
      %69 = arith.addf %66, %68 : vector<8x1xf32>
      %cst_19 = arith.constant 0.000000e+00 : f32
      %70 = vector.broadcast %cst_19 : f32 to vector<8x1xf32>
      %71 = arith.subf %70, %69 : vector<8x1xf32>
      %72 = tpu.transpose %71, [1, 0] : vector<8x1xf32> -> vector<1x8xf32>
      %c0_20 = arith.constant 0 : index
      %c0_21 = arith.constant 0 : index
      %73 = vector.load %arg4[%c0_20, %c0_21] : memref<1x8xf32, #tpu.memory_space<vmem>>, vector<1x8xf32>
      tpu.vector_store %arg4[%c0_20, %c0_21], %72 {strides = array<i32>} : memref<1x8xf32, #tpu.memory_space<vmem>>, vector<1x8xf32>,
    } else {
    }
    return
  }
  func.func @transform_0(%arg0: i32, %arg1: i32) -> (i32, i32) {
    %c0_i32 = arith.constant 0 : i32
    %c0_i32_0 = arith.constant 0 : i32
    return %arg0, %c0_i32 : i32, i32
  }
  func.func @transform_1(%arg0: i32, %arg1: i32) -> (i32, i32) {
    %c0_i32 = arith.constant 0 : i32
    %c0_i32_0 = arith.constant 0 : i32
    return %arg1, %c0_i32 : i32, i32
  }
  func.func @transform_2(%arg0: i32, %arg1: i32) -> (i32, i32) {
    %c0_i32 = arith.constant 0 : i32
    %c0_i32_0 = arith.constant 0 : i32
    return %c0_i32, %arg0 : i32, i32
  }
}

</mosaic_0001>

<llo_original>
// kernel: tpu_custom_call.1
$region0: #{tpu_custom_call.1}
  #allocation0 [shape = 'u32[]', space=smem, size = 0x4, offset = 0x4, fixed_abs, tag = 'smem constant byte address 0x4 - core index']
  #allocation1 [shape = 'u32[144,128]{1,0:T(1,128)}', space=vmem, size = 0x12000, scoped, tag = 'internal scratch']
  #allocation2 [shape = 'f32[88,32]{1,0:T(8,128)}', space=vmem, size = 0xb000, scoped, tag = 'scratch operand']
  %s0 = inlined_call_operand.vmem [shape: s32[88,1], index: 0, kind: input, shape index: {}]
  %s1 = inlined_call_operand.vmem [shape: f32[256,32], index: 1, kind: input, shape index: {}]
  %s2 = inlined_call_operand.hbm [shape: f32[1,8], index: 2, kind: output, shape index: {}]
  %s3 = sld [smem:[#allocation0]]
  $region49: #{tpu_custom_call.1} parent=0
    _
  %s5 = ssub.s32 1, %s3
  %s6 = scalar_select 0, %s5, %s3
  $region1: #{tpu_custom_call.1} parent=0
    #allocation3 [shape = 'u8[512]{0}', space=vmem, size = 0x400, scoped, tag = 'output window, operand 0, single buffered']
    #allocation4 [shape = 's32[2]{0}', space=sflag, size = 0x8, scoped, tag = 'scoped memory for tpu_custom_call.1']
    %7 = vsyncpa [#allocation4], 0
    loop: start=0, step=1, limit=4
    $region2: #{tpu_custom_call.1} parent=1 // loop_pre_header
      _
    $region3: #{tpu_custom_call.1} parent=1 // loop_header
      %s9 = sphi 0, %s13
      %p10 = scmp.ge.s32.totalorder %s9, 4
      %s16 = sphi 0, %s28
      %s17 = sphi 0, %s24
      %s18 = sphi 0, %s16
      %s19 = sphi 0, %s17
      %s20 = sphi 0, %s18
      %s21 = sphi 0, %s19
      %s31 = sphi 0, %s33
      %s34 = sphi 0, %s31
      %s35 = sphi 0, %s34
      %s51 = sphi 0, %s35
      %s57 = sphi 0, %s59
      %s60 = sphi 0, %s57
      %s61 = sphi 0, %s60
      %s77 = sphi 0, %s61
      %s83 = sphi 0, %s85
      %s86 = sphi 0, %s83
      %s87 = sphi 0, %s86
      %s103 = sphi 0, %s87
    $region4: #{tpu_custom_call.1} parent=1 // loop_header_branch
      %12 = sbr.rel (%p10) target = $region8
    $region5: #{tpu_custom_call.1} parent=1 // loop_body
      %s14 = ssub.s32 %s9, 1
      %s15 = ssub.s32 %s9, 2
      %s22 = sadd.s32 1, %s17
      %p23 = scmp.ge.s32.totalorder %s22, 2
      %s24 = scalar_select %p23, 0, %s22
      %s25 = sadd.s32 1, %s16
      %s26 = scalar_select %p23, %s25, %s16
      %p27 = scmp.ge.s32.totalorder %s26, 1
      %s28 = scalar_select %p27, 0, %s26
      %s29 = ssub.s32 %s16, %s28
      %p30 = scmp.eq.s32.totalorder %s29, 0
      %s32 = sadd.s32 %s31, 1
      %s33 = scalar_select %p30, %s31, %s32
      %p36 = pneg %p30
      %p37 = scmp.eq.s32.totalorder %s9, 1
      %p38 = por %p36, %p37
      %p39 = scmp.ne.s32.totalorder %s31, %s34
      %p40 = scmp.eq.s32.totalorder %s9, 0
      %p41 = por %p39, %p40
      %p42 = scmp.ne.s32.totalorder %s31, %s34
      %p43 = scmp.eq.s32.totalorder %s14, 1
      %p44 = por %p42, %p43
      %p45 = scmp.ne.s32.totalorder %s34, %s35
      %p46 = scmp.eq.s32.totalorder %s14, 0
      %p47 = por %p45, %p46
      %p48 = scmp.ne.s32.totalorder %s34, %s35
      %p49 = scmp.eq.s32.totalorder %s15, 1
      %p50 = por %p48, %p49
      %p52 = scmp.ne.s32.totalorder %s35, %s51
      %p53 = scmp.eq.s32.totalorder %s15, 0
      %p54 = por %p52, %p53
      %s55 = ssub.s32 %s17, %s24
      %p56 = scmp.eq.s32.totalorder %s55, 0
      %s58 = sadd.s32 %s57, 1
      %s59 = scalar_select %p56, %s57, %s58
      %p62 = pneg %p56
      %p63 = scmp.eq.s32.totalorder %s9, 1
      %p64 = por %p62, %p63
      %p65 = scmp.ne.s32.totalorder %s57, %s60
      %p66 = scmp.eq.s32.totalorder %s9, 0
      %p67 = por %p65, %p66
      %p68 = scmp.ne.s32.totalorder %s57, %s60
      %p69 = scmp.eq.s32.totalorder %s14, 1
      %p70 = por %p68, %p69
      %p71 = scmp.ne.s32.totalorder %s60, %s61
      %p72 = scmp.eq.s32.totalorder %s14, 0
      %p73 = por %p71, %p72
      %p74 = scmp.ne.s32.totalorder %s60, %s61
      %p75 = scmp.eq.s32.totalorder %s15, 1
      %p76 = por %p74, %p75
      %p78 = scmp.ne.s32.totalorder %s61, %s77
      %p79 = scmp.eq.s32.totalorder %s15, 0
      %p80 = por %p78, %p79
      %s81 = ssub.s32 %s16, %s28
      %p82 = scmp.eq.s32.totalorder %s81, 0
      %s84 = sadd.s32 %s83, 1
      %s85 = scalar_select %p82, %s83, %s84
      %p88 = pneg %p82
      %p89 = scmp.eq.s32.totalorder %s9, 1
      %p90 = por %p88, %p89
      %p91 = scmp.ne.s32.totalorder %s83, %s86
      %p92 = scmp.eq.s32.totalorder %s9, 0
      %p93 = por %p91, %p92
      %p94 = scmp.ne.s32.totalorder %s83, %s86
      %p95 = scmp.eq.s32.totalorder %s14, 1
      %p96 = por %p94, %p95
      %p97 = scmp.ne.s32.totalorder %s86, %s87
      %p98 = scmp.eq.s32.totalorder %s14, 0
      %p99 = por %p97, %p98
      %p100 = scmp.ne.s32.totalorder %s86, %s87
      %p101 = scmp.eq.s32.totalorder %s15, 1
      %p102 = por %p100, %p101
      %p104 = scmp.ne.s32.totalorder %s87, %s103
      %p105 = scmp.eq.s32.totalorder %s15, 0
      %p106 = por %p104, %p105
      %p107 = scmp.le.s32.totalorder 1, %s9
      %p108 = scmp.lt.s32.totalorder %s9, 3
      %p109 = pnand %p107, %p108
      %p110 = pneg %p109
      // Predicated region
      $region9: #{tpu_custom_call.1} parent=5 // pred_check
        _
      $region10: #{tpu_custom_call.1} parent=5 // pred_check_branch
        %112 = sbr.rel (%p109) target = $region12
      $region11: #{tpu_custom_call.1} parent=5 // pred_region
        %s113 = ssub.s32 %s9, 1
        // Predicated region
        $region13: #{tpu_custom_call.1} parent=11 // pred_check
          %p114 = pneg %p47
        $region14: #{tpu_custom_call.1} parent=11 // pred_check_branch
          %116 = sbr.rel (%p114) target = $region16
        $region15: #{tpu_custom_call.1} parent=11 // pred_region
          %s117 = smul.u32 11, %s18
          %p118 = scmp.lt.s32.totalorder %s117, 10
          %s119 = scalar_select %p118, %s117, 10
          %s120 = smul.addr %s119, 8
          %s121 = scalar_lea.vmem %s0, %s120
          %s122 = smul.u32 11, %s18
        $region16: #{tpu_custom_call.1} parent=11 // pred_fallthru
          _
      $region12: #{tpu_custom_call.1} parent=5 // pred_fallthru
        _
      %p123 = scmp.lt.s32.totalorder %s9, 2
      // Predicated region
      $region17: #{tpu_custom_call.1} parent=5 // pred_check
        %p124 = pneg %p123
      $region18: #{tpu_custom_call.1} parent=5 // pred_check_branch
        %126 = sbr.rel (%p124) target = $region20
      $region19: #{tpu_custom_call.1} parent=5 // pred_region
        // Predicated region
        $region21: #{tpu_custom_call.1} parent=19 // pred_check
          %p127 = pneg %p67
        $region22: #{tpu_custom_call.1} parent=19 // pred_check_branch
          %129 = sbr.rel (%p127) target = $region24
        $region23: #{tpu_custom_call.1} parent=19 // pred_region
          %s130 = smul.u32 16, %s17
          %p131 = scmp.lt.s32.totalorder %s130, 31
          %s132 = scalar_select %p131, %s130, 31
          %s133 = smul.addr %s132, 8
          %s134 = scalar_lea.vmem %s1, %s133
          %s135 = smul.u32 16, %s17
        $region24: #{tpu_custom_call.1} parent=19 // pred_fallthru
          _
      $region20: #{tpu_custom_call.1} parent=5 // pred_fallthru
        _
      %p136 = scmp.le.s32.totalorder 1, %s9
      %p137 = scmp.lt.s32.totalorder %s9, 3
      %p138 = pnand %p136, %p137
      %p139 = pneg %p138
      // Predicated region
      $region25: #{tpu_custom_call.1} parent=5 // pred_check
        _
      $region26: #{tpu_custom_call.1} parent=5 // pred_check_branch
        %141 = sbr.rel (%p138) target = $region28
      $region27: #{tpu_custom_call.1} parent=5 // pred_region
        %s142 = ssub.s32 %s9, 1
        %s143 = smul.u32 11, %s18
        %p144 = scmp.lt.s32.totalorder %s143, 10
        %s145 = scalar_select %p144, %s143, 10
        %s146 = smul.addr %s145, 8
        %s147 = scalar_lea.vmem %s0, %s146
        %p148 = pneg %p47
        %p149 = pneg %p44
        %s150 = smul.u32 16, %s19
        %p151 = scmp.lt.s32.totalorder %s150, 31
        %s152 = scalar_select %p151, %s150, 31
        %s153 = smul.addr %s152, 8
        %s154 = scalar_lea.vmem %s1, %s153
        %p155 = pneg %p73
        %p156 = pneg %p70
        %p157 = pneg %p99
        %p158 = pneg %p96
        %s159 = smul.u32 11, %s18
        %p160 = scmp.lt.s32.totalorder %s159, 10
        %s161 = scalar_select %p160, %s159, 10
        %s162 = smul.addr %s161, 8
        %s163 = scalar_lea.vmem %s0, %s162
        %s164 = smul.u32 11, %s18
        %s165 = smul.u32 16, %s19
        %p166 = scmp.lt.s32.totalorder %s165, 31
        %s167 = scalar_select %p166, %s165, 31
        %s168 = smul.addr %s167, 8
        %s169 = scalar_lea.vmem %s1, %s168
        %s170 = smul.u32 16, %s19
        %p171 = scmp.eq.s32.totalorder %s19, 0
        // Predicated region
        $region29: #{tpu_custom_call.1} parent=27 // pred_check
          %p172 = pneg %p171
        $region30: #{tpu_custom_call.1} parent=27 // pred_check_branch
          %174 = sbr.rel (%p172) target = $region32
        $region31: #{tpu_custom_call.1} parent=27 // pred_region
          %vm175 = vcmask 261120
          %176 = vst.msk [vmem:[#allocation2] sm:$0xff] %vm175, 0.0
          %177 = vst.msk [vmem:[#allocation2 + $0x8] sm:$0xff] %vm175, 0.0
          %178 = vst.msk [vmem:[#allocation2 + $0x10] sm:$0xff] %vm175, 0.0
          %179 = vst.msk [vmem:[#allocation2 + $0x18] sm:$0xff] %vm175, 0.0
          %180 = vst.msk [vmem:[#allocation2 + $0x20] sm:$0xff] %vm175, 0.0
          %181 = vst.msk [vmem:[#allocation2 + $0x28] sm:$0xff] %vm175, 0.0
          %182 = vst.msk [vmem:[#allocation2 + $0x30] sm:$0xff] %vm175, 0.0
          %183 = vst.msk [vmem:[#allocation2 + $0x38] sm:$0xff] %vm175, 0.0
          %184 = vst.msk [vmem:[#allocation2 + $0x40] sm:$0xff] %vm175, 0.0
          %185 = vst.msk [vmem:[#allocation2 + $0x48] sm:$0xff] %vm175, 0.0
          %186 = vst.msk [vmem:[#allocation2 + $0x50] sm:$0xff] %vm175, 0.0
        $region32: #{tpu_custom_call.1} parent=27 // pred_fallthru
          _
        %v187 = vld [vmem:[%s163] sm:$0xff]
        %v188 = vld [vmem:[%s163 + $0x8] sm:$0xff]
        %v189 = vld [vmem:[%s163 + $0x10] sm:$0xff]
        %v190 = vld [vmem:[%s163 + $0x18] sm:$0xff]
        %v191 = vld [vmem:[%s163 + $0x20] sm:$0xff]
        %v192 = vld [vmem:[%s163 + $0x28] sm:$0xff]
        %v193 = vld [vmem:[%s163 + $0x30] sm:$0xff]
        %v194 = vld [vmem:[%s163 + $0x38] sm:$0xff]
        %v195 = vld [vmem:[%s163 + $0x40] sm:$0xff]
        %v196 = vld [vmem:[%s163 + $0x48] sm:$0xff]
        %v197 = vld [vmem:[%s163 + $0x50] sm:$0xff]
        %v198 = vlaneseq
        %v199 = vand.u32 %v198, 127
        %s200 = smul.u32 %s19, 128
        %v201 = vstv %s200
        %v202 = vadd.s32 %v199, %v201
        %203 = vset.pattern.permute.xlu0 0
        %204 = vperm.xlu0 %203, %v187
        %v205 = vpop.permute.xlu0 %204
        %206 = vset.pattern.permute.xlu0 0
        %207 = vperm.xlu0 %206, %v188
        %v208 = vpop.permute.xlu0 %207
        %209 = vset.pattern.permute.xlu0 0
        %210 = vperm.xlu0 %209, %v189
        %v211 = vpop.permute.xlu0 %210
        %212 = vset.pattern.permute.xlu0 0
        %213 = vperm.xlu0 %212, %v190
        %v214 = vpop.permute.xlu0 %213
        %215 = vset.pattern.permute.xlu0 0
        %216 = vperm.xlu0 %215, %v191
        %v217 = vpop.permute.xlu0 %216
        %218 = vset.pattern.permute.xlu0 0
        %219 = vperm.xlu0 %218, %v192
        %v220 = vpop.permute.xlu0 %219
        %221 = vset.pattern.permute.xlu0 0
        %222 = vperm.xlu0 %221, %v193
        %v223 = vpop.permute.xlu0 %222
        %224 = vset.pattern.permute.xlu0 0
        %225 = vperm.xlu0 %224, %v194
        %v226 = vpop.permute.xlu0 %225
        %227 = vset.pattern.permute.xlu0 0
        %228 = vperm.xlu0 %227, %v195
        %v229 = vpop.permute.xlu0 %228
        %230 = vset.pattern.permute.xlu0 0
        %231 = vperm.xlu0 %230, %v196
        %v232 = vpop.permute.xlu0 %231
        %233 = vset.pattern.permute.xlu0 0
        %234 = vperm.xlu0 %233, %v197
        %v235 = vpop.permute.xlu0 %234
        %vm236 = vcmp.eq.s32.totalorder %v202, %v205
        %vm237 = vcmp.eq.s32.totalorder %v202, %v208
        %vm238 = vcmp.eq.s32.totalorder %v202, %v211
        %vm239 = vcmp.eq.s32.totalorder %v202, %v214
        %vm240 = vcmp.eq.s32.totalorder %v202, %v217
        %vm241 = vcmp.eq.s32.totalorder %v202, %v220
        %vm242 = vcmp.eq.s32.totalorder %v202, %v223
        %vm243 = vcmp.eq.s32.totalorder %v202, %v226
        %vm244 = vcmp.eq.s32.totalorder %v202, %v229
        %vm245 = vcmp.eq.s32.totalorder %v202, %v232
        %vm246 = vcmp.eq.s32.totalorder %v202, %v235
        %v247 = vsel %vm236, 1, 0
        %v248 = vsel %vm237, 1, 0
        %v249 = vsel %vm238, 1, 0
        %v250 = vsel %vm239, 1, 0
        %v251 = vsel %vm240, 1, 0
        %v252 = vsel %vm241, 1, 0
        %v253 = vsel %vm242, 1, 0
        %v254 = vsel %vm243, 1, 0
        %v255 = vsel %vm244, 1, 0
        %v256 = vsel %vm245, 1, 0
        %v257 = vsel %vm246, 1, 0
        %v258 = vcvt.s32.f32 %v247
        %v259 = vcvt.s32.f32 %v248
        %v260 = vcvt.s32.f32 %v249
        %v261 = vcvt.s32.f32 %v250
        %v262 = vcvt.s32.f32 %v251
        %v263 = vcvt.s32.f32 %v252
        %v264 = vcvt.s32.f32 %v253
        %v265 = vcvt.s32.f32 %v254
        %v266 = vcvt.s32.f32 %v255
        %v267 = vcvt.s32.f32 %v256
        %v268 = vcvt.s32.f32 %v257
        %v269 = vld [vmem:[#allocation2] sm:$0xff]
        %v270 = vld [vmem:[#allocation2 + $0x8] sm:$0xff]
        %v271 = vld [vmem:[#allocation2 + $0x10] sm:$0xff]
        %v272 = vld [vmem:[#allocation2 + $0x18] sm:$0xff]
        %v273 = vld [vmem:[#allocation2 + $0x20] sm:$0xff]
        %v274 = vld [vmem:[#allocation2 + $0x28] sm:$0xff]
        %v275 = vld [vmem:[#allocation2 + $0x30] sm:$0xff]
        %v276 = vld [vmem:[#allocation2 + $0x38] sm:$0xff]
        %v277 = vld [vmem:[#allocation2 + $0x40] sm:$0xff]
        %v278 = vld [vmem:[#allocation2 + $0x48] sm:$0xff]
        %v279 = vld [vmem:[#allocation2 + $0x50] sm:$0xff]
        %v280 = vld [vmem:[%s169] sm:$0xff]
        %v281 = vld [vmem:[%s169 + $0x8] sm:$0xff]
        %v282 = vld [vmem:[%s169 + $0x10] sm:$0xff]
        %v283 = vld [vmem:[%s169 + $0x18] sm:$0xff]
        %v284 = vld [vmem:[%s169 + $0x20] sm:$0xff]
        %v285 = vld [vmem:[%s169 + $0x28] sm:$0xff]
        %v286 = vld [vmem:[%s169 + $0x30] sm:$0xff]
        %v287 = vld [vmem:[%s169 + $0x38] sm:$0xff]
        %v288 = vld [vmem:[%s169 + $0x40] sm:$0xff]
        %v289 = vld [vmem:[%s169 + $0x48] sm:$0xff]
        %v290 = vld [vmem:[%s169 + $0x50] sm:$0xff]
        %v291 = vld [vmem:[%s169 + $0x58] sm:$0xff]
        %v292 = vld [vmem:[%s169 + $0x60] sm:$0xff]
        %v293 = vld [vmem:[%s169 + $0x68] sm:$0xff]
        %v294 = vld [vmem:[%s169 + $0x70] sm:$0xff]
        %v295 = vld [vmem:[%s169 + $0x78] sm:$0xff]
        %296 = vmatprep.subr.mxu0 0.0
        %297 = vmatpush1.msra.mxu0 %v295
        %298 = vmatprep.subr.mxu0 0.0
        %299 = vmatpush1.msra.mxu0 %v294
        %300 = vmatprep.subr.mxu0 0.0
        %301 = vmatpush1.msra.mxu0 %v293
        %302 = vmatprep.subr.mxu0 0.0
        %303 = vmatpush1.msra.mxu0 %v292
        %304 = vmatprep.subr.mxu0 0.0
        %305 = vmatpush1.msra.mxu0 %v291
        %306 = vmatprep.subr.mxu0 0.0
        %307 = vmatpush1.msra.mxu0 %v290
        %308 = vmatprep.subr.mxu0 0.0
        %309 = vmatpush1.msra.mxu0 %v289
        %310 = vmatprep.subr.mxu0 0.0
        %311 = vmatpush1.msra.mxu0 %v288
        %312 = vmatprep.subr.mxu0 0.0
        %313 = vmatpush1.msra.mxu0 %v287
        %314 = vmatprep.subr.mxu0 0.0
        %315 = vmatpush1.msra.mxu0 %v286
        %316 = vmatprep.subr.mxu0 0.0
        %317 = vmatpush1.msra.mxu0 %v285
        %318 = vmatprep.subr.mxu0 0.0
        %319 = vmatpush1.msra.mxu0 %v284
        %320 = vmatprep.subr.mxu0 0.0
        %321 = vmatpush1.msra.mxu0 %v283
        %322 = vmatprep.subr.mxu0 0.0
        %323 = vmatpush1.msra.mxu0 %v282
        %324 = vmatprep.subr.mxu0 0.0
        %325 = vmatpush1.msra.mxu0 %v281
        %326 = vmatprep.subr.mxu0 0.0
        %327 = vmatpush1.msra.mxu0 %v280
        %328 = vmatprep.subr.mxu0 0.0
        %329 = vmatpush2.msra.mxu0 0.0
        %330 = vmatprep.subr.mxu0 0.0
        %331 = vmatpush2.msra.mxu0 0.0
        %332 = vmatprep.subr.mxu0 0.0
        %333 = vmatpush2.msra.mxu0 0.0
        %334 = vmatprep.subr.mxu0 0.0
        %335 = vmatpush2.msra.mxu0 0.0
        %336 = vmatprep.subr.mxu0 0.0
        %337 = vmatpush2.msra.mxu0 0.0
        %338 = vmatprep.subr.mxu0 0.0
        %339 = vmatpush2.msra.mxu0 0.0
        %340 = vmatprep.subr.mxu0 0.0
        %341 = vmatpush2.msra.mxu0 0.0
        %342 = vmatprep.subr.mxu0 0.0
        %343 = vmatpush2.msra.mxu0 0.0
        %344 = vmatprep.subr.mxu0 0.0
        %345 = vmatpush2.msra.mxu0 0.0
        %346 = vmatprep.subr.mxu0 0.0
        %347 = vmatpush2.msra.mxu0 0.0
        %348 = vmatprep.subr.mxu0 0.0
        %349 = vmatpush2.msra.mxu0 0.0
        %350 = vmatprep.subr.mxu0 0.0
        %351 = vmatpush2.msra.mxu0 0.0
        %352 = vmatprep.subr.mxu0 0.0
        %353 = vmatpush2.msra.mxu0 0.0
        %354 = vmatprep.subr.mxu0 0.0
        %355 = vmatpush2.msra.mxu0 0.0
        %356 = vmatprep.subr.mxu0 0.0
        %357 = vmatpush2.msra.mxu0 0.0
        %358 = vmatprep.subr.mxu0 0.0
        %359 = vmatpush2.msra.mxu0 0.0
        %360 = vmatprep.mubr.f32.mxu0 0.0
        %361 = vmatmul.mubr.f32.gmra.mxu0 %v258
        %v362 = vpop.f32.mrf.mxu0
        %v363 = vadd.f32 0.0, %v362
        %v364 = vpop.f32.mrf.mxu0
        %365 = vmatprep.mubr.f32.mxu0 0.0
        %366 = vmatmul.mubr.f32.gmra.mxu0 %v259
        %v367 = vpop.f32.mrf.mxu0
        %v368 = vadd.f32 0.0, %v367
        %v369 = vpop.f32.mrf.mxu0
        %370 = vmatprep.mubr.f32.mxu0 0.0
        %371 = vmatmul.mubr.f32.gmra.mxu0 %v260
        %v372 = vpop.f32.mrf.mxu0
        %v373 = vadd.f32 0.0, %v372
        %v374 = vpop.f32.mrf.mxu0
        %375 = vmatprep.mubr.f32.mxu0 0.0
        %376 = vmatmul.mubr.f32.gmra.mxu0 %v261
        %v377 = vpop.f32.mrf.mxu0
        %v378 = vadd.f32 0.0, %v377
        %v379 = vpop.f32.mrf.mxu0
        %380 = vmatprep.mubr.f32.mxu0 0.0
        %381 = vmatmul.mubr.f32.gmra.mxu0 %v262
        %v382 = vpop.f32.mrf.mxu0
        %v383 = vadd.f32 0.0, %v382
        %v384 = vpop.f32.mrf.mxu0
        %385 = vmatprep.mubr.f32.mxu0 0.0
        %386 = vmatmul.mubr.f32.gmra.mxu0 %v263
        %v387 = vpop.f32.mrf.mxu0
        %v388 = vadd.f32 0.0, %v387
        %v389 = vpop.f32.mrf.mxu0
        %390 = vmatprep.mubr.f32.mxu0 0.0
        %391 = vmatmul.mubr.f32.gmra.mxu0 %v264
        %v392 = vpop.f32.mrf.mxu0
        %v393 = vadd.f32 0.0, %v392
        %v394 = vpop.f32.mrf.mxu0
        %395 = vmatprep.mubr.f32.mxu0 0.0
        %396 = vmatmul.mubr.f32.gmra.mxu0 %v265
        %v397 = vpop.f32.mrf.mxu0
        %v398 = vadd.f32 0.0, %v397
        %v399 = vpop.f32.mrf.mxu0
        %400 = vmatprep.mubr.f32.mxu0 0.0
        %401 = vmatmul.mubr.f32.gmra.mxu0 %v266
        %v402 = vpop.f32.mrf.mxu0
        %v403 = vadd.f32 0.0, %v402
        %v404 = vpop.f32.mrf.mxu0
        %405 = vmatprep.mubr.f32.mxu0 0.0
        %406 = vmatmul.mubr.f32.gmra.mxu0 %v267
        %v407 = vpop.f32.mrf.mxu0
        %v408 = vadd.f32 0.0, %v407
        %v409 = vpop.f32.mrf.mxu0
        %410 = vmatprep.mubr.f32.mxu0 0.0
        %411 = vmatmul.mubr.f32.gmra.mxu0 %v268
        %v412 = vpop.f32.mrf.mxu0
        %v413 = vadd.f32 0.0, %v412
        %v414 = vpop.f32.mrf.mxu0
        %415 = vdwg.mxu0
        %v416 = vadd.f32 %v269, %v363
        %v417 = vadd.f32 %v270, %v368
        %v418 = vadd.f32 %v271, %v373
        %v419 = vadd.f32 %v272, %v378
        %v420 = vadd.f32 %v273, %v383
        %v421 = vadd.f32 %v274, %v388
        %v422 = vadd.f32 %v275, %v393
        %v423 = vadd.f32 %v276, %v398
        %v424 = vadd.f32 %v277, %v403
        %v425 = vadd.f32 %v278, %v408
        %v426 = vadd.f32 %v279, %v413
        %vm427 = vcmask 261120
        %428 = vst.msk [vmem:[#allocation2] sm:$0xff] %vm427, %v416
        %429 = vst.msk [vmem:[#allocation2 + $0x8] sm:$0xff] %vm427, %v417
        %430 = vst.msk [vmem:[#allocation2 + $0x10] sm:$0xff] %vm427, %v418
        %431 = vst.msk [vmem:[#allocation2 + $0x18] sm:$0xff] %vm427, %v419
        %432 = vst.msk [vmem:[#allocation2 + $0x20] sm:$0xff] %vm427, %v420
        %433 = vst.msk [vmem:[#allocation2 + $0x28] sm:$0xff] %vm427, %v421
        %434 = vst.msk [vmem:[#allocation2 + $0x30] sm:$0xff] %vm427, %v422
        %435 = vst.msk [vmem:[#allocation2 + $0x38] sm:$0xff] %vm427, %v423
        %436 = vst.msk [vmem:[#allocation2 + $0x40] sm:$0xff] %vm427, %v424
        %437 = vst.msk [vmem:[#allocation2 + $0x48] sm:$0xff] %vm427, %v425
        %438 = vst.msk [vmem:[#allocation2 + $0x50] sm:$0xff] %vm427, %v426
        %p439 = scmp.eq.s32.totalorder %s19, 1
        // Predicated region
        $region33: #{tpu_custom_call.1} parent=27 // pred_check
          %p440 = pneg %p439
        $region34: #{tpu_custom_call.1} parent=27 // pred_check_branch
          %442 = sbr.rel (%p440) target = $region36
        $region35: #{tpu_custom_call.1} parent=27 // pred_region
          %v443 = vld [vmem:[#allocation2] sm:$0xff]
          %v444 = vld [vmem:[#allocation2 + $0x8] sm:$0xff]
          %v445 = vld [vmem:[#allocation2 + $0x10] sm:$0xff]
          %v446 = vld [vmem:[#allocation2 + $0x18] sm:$0xff]
          %v447 = vld [vmem:[#allocation2 + $0x20] sm:$0xff]
          %v448 = vld [vmem:[#allocation2 + $0x28] sm:$0xff]
          %v449 = vld [vmem:[#allocation2 + $0x30] sm:$0xff]
          %v450 = vld [vmem:[#allocation2 + $0x38] sm:$0xff]
          %v451 = vld [vmem:[#allocation2 + $0x40] sm:$0xff]
          %v452 = vld [vmem:[#allocation2 + $0x48] sm:$0xff]
          %v453 = vld [vmem:[#allocation2 + $0x50] sm:$0xff]
          %v454 = vmul.f32 %v443, %v444
          %v455 = vmul.f32 %v443, %v445
          %v456 = vmul.f32 %v443, %v446
          %v457 = vmul.f32 %v443, %v447
          %v458 = vmul.f32 %v443, %v448
          %v459 = vmul.f32 %v443, %v449
          %v460 = vmul.f32 %v443, %v450
          %v461 = vmul.f32 %v443, %v451
          %v462 = vmul.f32 %v443, %v452
          %v463 = vmul.f32 %v443, %v453
          %v464 = vsel %vm427, %v454, 0.0
          %465 = vadd.xlane.f32.xlu0 %v464
          %v466 = vpop.xlane.xlu0 %465
          %v467 = vsel %vm427, %v455, 0.0
          %468 = vadd.xlane.f32.xlu0 %v467
          %v469 = vpop.xlane.xlu0 %468
          %v470 = vsel %vm427, %v456, 0.0
          %471 = vadd.xlane.f32.xlu0 %v470
          %v472 = vpop.xlane.xlu0 %471
          %v473 = vsel %vm427, %v457, 0.0
          %474 = vadd.xlane.f32.xlu0 %v473
          %v475 = vpop.xlane.xlu0 %474
          %v476 = vsel %vm427, %v458, 0.0
          %477 = vadd.xlane.f32.xlu0 %v476
          %v478 = vpop.xlane.xlu0 %477
          %v479 = vsel %vm427, %v459, 0.0
          %480 = vadd.xlane.f32.xlu0 %v479
          %v481 = vpop.xlane.xlu0 %480
          %v482 = vsel %vm427, %v460, 0.0
          %483 = vadd.xlane.f32.xlu0 %v482
          %v484 = vpop.xlane.xlu0 %483
          %v485 = vsel %vm427, %v461, 0.0
          %486 = vadd.xlane.f32.xlu0 %v485
          %v487 = vpop.xlane.xlu0 %486
          %v488 = vsel %vm427, %v462, 0.0
          %489 = vadd.xlane.f32.xlu0 %v488
          %v490 = vpop.xlane.xlu0 %489
          %v491 = vsel %vm427, %v463, 0.0
          %492 = vadd.xlane.f32.xlu0 %v491
          %v493 = vpop.xlane.xlu0 %492
          %v494 = vxor.u32 %v466, 2147483648
          %v495 = vxor.u32 %v469, 2147483648
          %v496 = vxor.u32 %v472, 2147483648
          %v497 = vxor.u32 %v475, 2147483648
          %v498 = vmul.f32 %v494, 1.442695
          %v499 = vpow.pop %v498
          %v500 = vmul.f32 %v495, 1.442695
          %v501 = vpow.pop %v500
          %v502 = vmul.f32 %v496, 1.442695
          %v503 = vpow.pop %v502
          %v504 = vmul.f32 %v497, 1.442695
          %v505 = vpow.pop %v504
          %v506 = vadd.f32 %v499, 1.0
          %v507 = vadd.f32 %v501, 1.0
          %v508 = vadd.f32 %v503, 1.0
          %v509 = vadd.f32 %v505, 1.0
          %v510 = vrcp.pop %v506
          %v511 = vmul.f32 1.0, %v510
          %v512 = vrcp.pop %v507
          %v513 = vmul.f32 1.0, %v512
          %v514 = vrcp.pop %v508
          %v515 = vmul.f32 1.0, %v514
          %v516 = vrcp.pop %v509
          %v517 = vmul.f32 1.0, %v516
          %v518 = vadd.f32 %v511, 1e-15
          %v519 = vadd.f32 %v513, 1e-15
          %v520 = vadd.f32 %v515, 1e-15
          %v521 = vadd.f32 %v517, 1e-15
          %v522 = vlog2.pop %v518
          %v523 = vmul.f32 %v522, 0.6931472
          %v524 = vlog2.pop %v519
          %v525 = vmul.f32 %v524, 0.6931472
          %v526 = vlog2.pop %v520
          %v527 = vmul.f32 %v526, 0.6931472
          %v528 = vlog2.pop %v521
          %v529 = vmul.f32 %v528, 0.6931472
          %v530 = vxor.u32 %v478, 2147483648
          %v531 = vxor.u32 %v481, 2147483648
          %v532 = vxor.u32 %v484, 2147483648
          %v533 = vxor.u32 %v487, 2147483648
          %v534 = vxor.u32 %v490, 2147483648
          %v535 = vxor.u32 %v493, 2147483648
          %v536 = vmul.f32 %v530, 1.442695
          %v537 = vpow.pop %v536
          %v538 = vmul.f32 %v531, 1.442695
          %v539 = vpow.pop %v538
          %v540 = vmul.f32 %v532, 1.442695
          %v541 = vpow.pop %v540
          %v542 = vmul.f32 %v533, 1.442695
          %v543 = vpow.pop %v542
          %v544 = vmul.f32 %v534, 1.442695
          %v545 = vpow.pop %v544
          %v546 = vmul.f32 %v535, 1.442695
          %v547 = vpow.pop %v546
          %v548 = vadd.f32 %v537, 1.0
          %v549 = vadd.f32 %v539, 1.0
          %v550 = vadd.f32 %v541, 1.0
          %v551 = vadd.f32 %v543, 1.0
          %v552 = vadd.f32 %v545, 1.0
          %v553 = vadd.f32 %v547, 1.0
          %v554 = vrcp.pop %v548
          %v555 = vmul.f32 1.0, %v554
          %v556 = vrcp.pop %v549
          %v557 = vmul.f32 1.0, %v556
          %v558 = vrcp.pop %v550
          %v559 = vmul.f32 1.0, %v558
          %v560 = vrcp.pop %v551
          %v561 = vmul.f32 1.0, %v560
          %v562 = vrcp.pop %v552
          %v563 = vmul.f32 1.0, %v562
          %v564 = vrcp.pop %v553
          %v565 = vmul.f32 1.0, %v564
          %v566 = vsub.f32 1.0, %v555
          %v567 = vsub.f32 1.0, %v557
          %v568 = vsub.f32 1.0, %v559
          %v569 = vsub.f32 1.0, %v561
          %v570 = vsub.f32 1.0, %v563
          %v571 = vsub.f32 1.0, %v565
          %v572 = vadd.f32 %v566, 1e-15
          %v573 = vadd.f32 %v567, 1e-15
          %v574 = vadd.f32 %v568, 1e-15
          %v575 = vadd.f32 %v569, 1e-15
          %v576 = vadd.f32 %v570, 1e-15
          %v577 = vadd.f32 %v571, 1e-15
          %v578 = vlog2.pop %v572
          %v579 = vmul.f32 %v578, 0.6931472
          %v580 = vlog2.pop %v573
          %v581 = vmul.f32 %v580, 0.6931472
          %v582 = vlog2.pop %v574
          %v583 = vmul.f32 %v582, 0.6931472
          %v584 = vlog2.pop %v575
          %v585 = vmul.f32 %v584, 0.6931472
          %v586 = vlog2.pop %v576
          %v587 = vmul.f32 %v586, 0.6931472
          %v588 = vlog2.pop %v577
          %v589 = vmul.f32 %v588, 0.6931472
          %v590 = vadd.f32 %v523, %v525
          %v591 = vadd.f32 %v590, %v527
          %v592 = vadd.f32 %v591, %v529
          %v593 = vadd.f32 %v579, %v581
          %v594 = vadd.f32 %v593, %v583
          %v595 = vadd.f32 %v594, %v585
          %v596 = vadd.f32 %v595, %v587
          %v597 = vadd.f32 %v596, %v589
          %v598 = vrcp.pop 4.0
          %v599 = vmul.f32 %v592, %v598
          %v600 = vrcp.pop 6.0
          %v601 = vmul.f32 %v597, %v600
          %v602 = vadd.f32 %v599, %v601
          %v603 = vsub.f32 0.0, %v602
          %604 = vxpose.xlu0.b32.start [1/16] %v603, 128
          %605 = vxpose.xlu0.b32.cont [2/16] 0.0, 128
          %606 = vxpose.xlu0.b32.cont [3/16] 0.0, 128
          %607 = vxpose.xlu0.b32.cont [4/16] 0.0, 128
          %608 = vxpose.xlu0.b32.cont [5/16] 0.0, 128
          %609 = vxpose.xlu0.b32.cont [6/16] 0.0, 128
          %610 = vxpose.xlu0.b32.cont [7/16] 0.0, 128
          %611 = vxpose.xlu0.b32.cont [8/16] 0.0, 128
          %612 = vxpose.xlu0.b32.cont [9/16] 0.0, 128
          %613 = vxpose.xlu0.b32.cont [10/16] 0.0, 128
          %614 = vxpose.xlu0.b32.cont [11/16] 0.0, 128
          %615 = vxpose.xlu0.b32.cont [12/16] 0.0, 128
          %616 = vxpose.xlu0.b32.cont [13/16] 0.0, 128
          %617 = vxpose.xlu0.b32.cont [14/16] 0.0, 128
          %618 = vxpose.xlu0.b32.cont [15/16] 0.0, 128
          %619 = vxpose.xlu0.b32.end [16/16] 0.0, 128
          %v620 = vpop.trf.xlu0
          %v621 = vpop.trf.xlu0
          %v622 = vpop.trf.xlu0
          %v623 = vpop.trf.xlu0
          %v624 = vpop.trf.xlu0
          %v625 = vpop.trf.xlu0
          %v626 = vpop.trf.xlu0
          %v627 = vpop.trf.xlu0
          %v628 = vpop.trf.xlu0
          %v629 = vpop.trf.xlu0
          %v630 = vpop.trf.xlu0
          %v631 = vpop.trf.xlu0
          %v632 = vpop.trf.xlu0
          %v633 = vpop.trf.xlu0
          %v634 = vpop.trf.xlu0
          %v635 = vpop.trf.xlu0
          %vm636 = vcmask 57344
          %637 = vst.msk [vmem:[#allocation3] sm:$0x1] %vm636, %v620
        $region36: #{tpu_custom_call.1} parent=27 // pred_fallthru
          _
        // Predicated region
        $region37: #{tpu_custom_call.1} parent=27 // pred_check
          %p638 = pneg %p96
        $region38: #{tpu_custom_call.1} parent=27 // pred_check_branch
          %640 = sbr.rel (%p638) target = $region40
        $region39: #{tpu_custom_call.1} parent=27 // pred_region
          %s642 = ssub.s32 16, 16
          %643 = vsyncadd [#allocation4], %s642
          %s644 = smul.addr %s18, 16
          %s645 = scalar_lea.hbm %s2, %s644
          %s647 = sshll.u32 [#allocation3], 4
          %s648 = int_to_ptr.vmem [resolvable:$true] %s647
          %650 = dma.vmem_to_hbm [thread:$0]  %s648, 16, %s645, [#allocation4]
        $region40: #{tpu_custom_call.1} parent=27 // pred_fallthru
          _
        // Predicated region
        $region41: #{tpu_custom_call.1} parent=27 // pred_check
          %p651 = pneg %p96
        $region42: #{tpu_custom_call.1} parent=27 // pred_check_branch
          %653 = sbr.rel (%p651) target = $region44
        $region43: #{tpu_custom_call.1} parent=27 // pred_region
          %654 = dma.done [#allocation4], 16
        $region44: #{tpu_custom_call.1} parent=27 // pred_fallthru
          _
      $region28: #{tpu_custom_call.1} parent=5 // pred_fallthru
        _
      %p655 = scmp.le.s32.totalorder 2, %s9
      // Predicated region
      $region45: #{tpu_custom_call.1} parent=5 // pred_check
        %p656 = pneg %p655
      $region46: #{tpu_custom_call.1} parent=5 // pred_check_branch
        %658 = sbr.rel (%p656) target = $region48
      $region47: #{tpu_custom_call.1} parent=5 // pred_region
        %s659 = ssub.s32 %s9, 2
      $region48: #{tpu_custom_call.1} parent=5 // pred_fallthru
        _
    $region6: #{tpu_custom_call.1} parent=1 // loop_footer
      %s13 = sadd.s32 1, %s9
    $region7: #{tpu_custom_call.1} parent=1 // loop_footer_branch
      %8 = sbr.rel target = $region3
    $region8: #{tpu_custom_call.1} parent=1 // loop_exit
      _
    %660 = vsyncpa [#allocation4], 1
    %s661 = scalar_lea.sflag [#allocation4], 1
    %662 = vsyncpa %s661, 1

</llo_original>
